<compile_context>
chip_gen: v7x
topology: tpu7x:2x2x1
jax: 0.10.0
libtpu: 0.0.40
codegen_flags: <defaults>
</compile_context>

<pallas_src>
import jax
import jax.numpy as jnp
from jax.experimental import pallas as pl
from jax.experimental.pallas import tpu as pltpu


# ---------------------------------------------------------------------------
# Kernel: streaming broadcast multiply  out{1,2}[i, :] = flat[i, :] * g{1,2}[0, :]
# ---------------------------------------------------------------------------
def _fs_mul_kernel(g1_ref, g2_ref, flat_ref, out1_ref, out2_ref):
    flat = flat_ref[...]                       # (TB, F), native dtype
    out1_ref[...] = flat * g1_ref[...]         # sublane-broadcast of the (1, F) gate
    out2_ref[...] = flat * g2_ref[...]


def _round_up(x, m):
    return (x + m - 1) // m * m


def _vmem_capacity_bytes():
    # Generation-aware: v5e/v6e have 128 MiB VMEM, v7x only 64 MiB.
    try:
        return int(pltpu.get_tpu_info().vmem_capacity_bytes)
    except Exception:
        return 64 * 1024 * 1024   # conservative fallback (covers v7x)


def _choose_batch_tile(B, F, itemsize, budget_bytes):
    # Sublane packing: 8 rows for 4-byte, 16 for 2-byte, 32 for 1-byte dtypes.
    sub = max(8, 32 // max(1, itemsize))
    row_bytes = F * itemsize
    # Working set per step: 3 (tb, F) slabs (flat in + two outs), double-buffered.
    tb = budget_bytes // (6 * row_bytes)
    tb = max(sub, (tb // sub) * sub)
    # Keep >= ~4 grid steps when the batch is big enough (v7x 2-TC sharding via the
    # "parallel" axis + pipeline overlap); never exceed the rounded-up batch.
    cap = max(sub, _round_up(pl.cdiv(B, 4), sub))
    tb = min(tb, cap, _round_up(B, sub))
    return tb


def _gate_row(ctx, wa, ba, wb, bb):
    # Tiny (1,E)@(E,H) -> ReLU -> (1,H)@(H,F) -> sigmoid*2 gate, in f32.
    f32 = jnp.float32
    h = jnp.maximum(jnp.dot(ctx.astype(f32), wa.astype(f32)) + ba.astype(f32), 0.0)
    g = jnp.dot(h, wb.astype(f32)) + bb.astype(f32)
    return jax.nn.sigmoid(g) * 2.0                         # (1, F), f32


def feature_selection_pallas(fs1_ctx, fs2_ctx, flat_emb, params):
    """FinalMLP FeatureSelection forward (fs1_context == fs2_context == [] case).

    fs1_ctx / fs2_ctx : (1, E) learned context bias rows (nn.Parameter in torch).
    flat_emb          : (B, F) flattened field embeddings.
    Returns (feature1, feature2), each (B, F) in flat_emb.dtype.
    """
    B, F = flat_emb.shape
    dtype = flat_emb.dtype
    itemsize = jnp.dtype(dtype).itemsize

    # ---- gates: computed once, outside the kernel, cast to the streaming dtype ----
    g1 = _gate_row(fs1_ctx, params["w1a"], params["b1a"],
                   params["w1b"], params["b1b"]).astype(dtype)      # (1, F)
    g2 = _gate_row(fs2_ctx, params["w2a"], params["b2a"],
                   params["w2b"], params["b2b"]).astype(dtype)      # (1, F)

    # ---- generation-aware VMEM budget & batch tile ----
    vmem_cap = _vmem_capacity_bytes()
    budget = min(int(vmem_cap * 5 // 8), 80 * 1024 * 1024)   # ~40 MiB on v7x, 80 MiB on v5e/v6e
    tb = _choose_batch_tile(B, F, itemsize, budget)
    grid = (pl.cdiv(B, tb),)                                 # boundary block handled by Pallas
    vmem_limit = min(vmem_cap, budget + 8 * 1024 * 1024)

    # NOTE: flat/out blocks span the full feature axis, so the block spec is legal for
    # any F; if F is not a multiple of 128 the boundary stores become masked vst.msk
    # (perf-only concern for unusual num_fields * embedding_dim configs).
    gate_spec = pl.BlockSpec((1, F), lambda i: (0, 0))       # VMEM-resident gate rows
    tile_spec = pl.BlockSpec((tb, F), lambda i: (i, 0))

    cost = pl.CostEstimate(
        flops=int(2 * B * F),
        transcendentals=0,
        bytes_accessed=int(3 * B * F * itemsize + 2 * F * itemsize),
    )

    feat1, feat2 = pl.pallas_call(
        _fs_mul_kernel,
        out_shape=(jax.ShapeDtypeStruct((B, F), dtype),
                   jax.ShapeDtypeStruct((B, F), dtype)),
        grid=grid,
        in_specs=(gate_spec, gate_spec, tile_spec),
        out_specs=(tile_spec, tile_spec),
        compiler_params=pltpu.CompilerParams(
            dimension_semantics=("parallel",),               # batch blocks independent
            vmem_limit_bytes=int(vmem_limit),
        ),
        cost_estimate=cost,
    )(g1, g2, flat_emb)

    return feat1, feat2


# ---------------------------------------------------------------------------
# Parameter init / pure-JAX reference
# ---------------------------------------------------------------------------
def _xavier_normal(key, fan_in, fan_out, dtype=jnp.float32):
    std = (2.0 / (fan_in + fan_out)) ** 0.5
    return std * jax.random.normal(key, (fan_in, fan_out), dtype=dtype)


def init_params(key, embedding_dim, hidden, feature_dim):
    ks = jax.random.split(key, 4)
    return {
        # fs1_gate: Linear(E -> H), ReLU, Linear(H -> F), Sigmoid
        "w1a": _xavier_normal(ks[0], embedding_dim, hidden),
        "b1a": jnp.zeros((1, hidden), jnp.float32),
        "w1b": _xavier_normal(ks[1], hidden, feature_dim),
        "b1b": jnp.zeros((1, feature_dim), jnp.float32),
        # fs2_gate
        "w2a": _xavier_normal(ks[2], embedding_dim, hidden),
        "b2a": jnp.zeros((1, hidden), jnp.float32),
        "w2b": _xavier_normal(ks[3], hidden, feature_dim),
        "b2b": jnp.zeros((1, feature_dim), jnp.float32),
    }


def reference_forward(fs1_ctx, fs2_ctx, flat_emb, p):
    g1 = _gate_row(fs1_ctx, p["w1a"], p["b1a"], p["w1b"], p["b1b"]).astype(flat_emb.dtype)
    g2 = _gate_row(fs2_ctx, p["w2a"], p["b2a"], p["w2b"], p["b2b"]).astype(flat_emb.dtype)
    return flat_emb * g1, flat_emb * g2


if __name__ == "__main__":
    # Module-consistent small shapes: embedding_dim=32, fs_hidden_units=[64],
    # num_fields=4 -> feature_dim = 4*32 = 128.
    E, H = 32, 64
    NUM_FIELDS = 4
    F = NUM_FIELDS * E

    key = jax.random.PRNGKey(0)
    k_param, k_flat1, k_flat2 = jax.random.split(key, 3)
    params = init_params(k_param, E, H, F)

    # fs*_context == [] -> learned (1, E) context bias, initialized to zeros (torch).
    fs1_ctx = jnp.zeros((1, E), jnp.float32)
    fs2_ctx = jnp.zeros((1, E), jnp.float32)

    # --- test 1: tile-divisible batch, f32 ---
    B = 8
    flat = jax.random.normal(k_flat1, (B, F), jnp.float32)
    f1, f2 = feature_selection_pallas(fs1_ctx, fs2_ctx, flat, params)
    jax.block_until_ready((f1, f2))
    r1, r2 = reference_forward(fs1_ctx, fs2_ctx, flat, params)
    assert jnp.allclose(f1, r1, atol=1e-5, rtol=1e-5)
    assert jnp.allclose(f2, r2, atol=1e-5, rtol=1e-5)

    # --- test 2: batch NOT divisible by the tile (exercises the boundary block) ---
    B2 = 13
    flat2 = jax.random.normal(k_flat2, (B2, F), jnp.float32)
    f1b, f2b = feature_selection_pallas(fs1_ctx, fs2_ctx, flat2, params)
    jax.block_until_ready((f1b, f2b))
    r1b, r2b = reference_forward(fs1_ctx, fs2_ctx, flat2, params)
    assert f1b.shape == (B2, F) and f2b.shape == (B2, F)
    assert jnp.allclose(f1b, r1b, atol=1e-5, rtol=1e-5)
    assert jnp.allclose(f2b, r2b, atol=1e-5, rtol=1e-5)

    # --- test 3: bf16 streaming path (dtype-native multiply, halves HBM traffic) ---
    flat_bf = flat.astype(jnp.bfloat16)
    f1c, f2c = feature_selection_pallas(fs1_ctx, fs2_ctx, flat_bf, params)
    jax.block_until_ready((f1c, f2c))
    r1c, r2c = reference_forward(fs1_ctx, fs2_ctx, flat_bf, params)
    assert jnp.allclose(f1c.astype(jnp.float32), r1c.astype(jnp.float32),
                        atol=2e-2, rtol=2e-2)
    assert jnp.allclose(f2c.astype(jnp.float32), r2c.astype(jnp.float32),
                        atol=2e-2, rtol=2e-2)

    print("KERNEL_OK")
</pallas_src>

<mosaic_0001>
module attributes {stable_mosaic.version = 11 : i64} {
  func.func @_fs_mul_kernel(%arg0: i32, %arg1: memref<1x128xf32, #tpu.memory_space<vmem>>, %arg2: memref<1x128xf32, #tpu.memory_space<vmem>>, %arg3: memref<8x128xf32, #tpu.memory_space<vmem>>, %arg4: memref<8x128xf32, #tpu.memory_space<vmem>>, %arg5: memref<8x128xf32, #tpu.memory_space<vmem>>) attributes {dimension_semantics = [#tpu.dimension_semantics<parallel>], iteration_bounds = array<i64: 1>, scalar_prefetch = 0 : i64, scratch_operands = 0 : i64, tpu.core_type = #tpu.core_type<tc>, window_params = [{pipeline_mode = #tpu.pipeline_mode<synchronous>, transform_indices = @transform_0, window_bounds = array<i64: 1, 128>}, {pipeline_mode = #tpu.pipeline_mode<synchronous>, transform_indices = @transform_1, window_bounds = array<i64: 1, 128>}, {transform_indices = @transform_2, window_bounds = array<i64: 8, 128>}, {transform_indices = @transform_3, window_bounds = array<i64: 8, 128>}, {transform_indices = @transform_4, window_bounds = array<i64: 8, 128>}]} {
    %c0 = arith.constant 0 : index
    %c0_0 = arith.constant 0 : index
    %0 = vector.load %arg3[%c0, %c0_0] : memref<8x128xf32, #tpu.memory_space<vmem>>, vector<8x128xf32>
    %c0_1 = arith.constant 0 : index
    %c0_2 = arith.constant 0 : index
    %1 = vector.load %arg1[%c0_1, %c0_2] : memref<1x128xf32, #tpu.memory_space<vmem>>, vector<1x128xf32>
    %2 = vector.broadcast %1 : vector<1x128xf32> to vector<8x128xf32>
    %3 = arith.mulf %0, %2 : vector<8x128xf32>
    %c0_3 = arith.constant 0 : index
    %c0_4 = arith.constant 0 : index
    %4 = vector.load %arg4[%c0_3, %c0_4] : memref<8x128xf32, #tpu.memory_space<vmem>>, vector<8x128xf32>
    tpu.vector_store %arg4[%c0_3, %c0_4], %3 {strides = array<i32>} : memref<8x128xf32, #tpu.memory_space<vmem>>, vector<8x128xf32>,
    %c0_5 = arith.constant 0 : index
    %c0_6 = arith.constant 0 : index
    %5 = vector.load %arg2[%c0_5, %c0_6] : memref<1x128xf32, #tpu.memory_space<vmem>>, vector<1x128xf32>
    %6 = vector.broadcast %5 : vector<1x128xf32> to vector<8x128xf32>
    %7 = arith.mulf %0, %6 : vector<8x128xf32>
    %c0_7 = arith.constant 0 : index
    %c0_8 = arith.constant 0 : index
    %8 = vector.load %arg5[%c0_7, %c0_8] : memref<8x128xf32, #tpu.memory_space<vmem>>, vector<8x128xf32>
    tpu.vector_store %arg5[%c0_7, %c0_8], %7 {strides = array<i32>} : memref<8x128xf32, #tpu.memory_space<vmem>>, vector<8x128xf32>,
    return
  }
  func.func @transform_0(%arg0: i32) -> (i32, i32) {
    %c0_i32 = arith.constant 0 : i32
    %c0_i32_0 = arith.constant 0 : i32
    %c0_i32_1 = arith.constant 0 : i32
    return %c0_i32, %c0_i32_0 : i32, i32
  }
  func.func @transform_1(%arg0: i32) -> (i32, i32) {
    %c0_i32 = arith.constant 0 : i32
    %c0_i32_0 = arith.constant 0 : i32
    %c0_i32_1 = arith.constant 0 : i32
    return %c0_i32, %c0_i32_0 : i32, i32
  }
  func.func @transform_2(%arg0: i32) -> (i32, i32) {
    %c0_i32 = arith.constant 0 : i32
    %c0_i32_0 = arith.constant 0 : i32
    return %arg0, %c0_i32 : i32, i32
  }
  func.func @transform_3(%arg0: i32) -> (i32, i32) {
    %c0_i32 = arith.constant 0 : i32
    %c0_i32_0 = arith.constant 0 : i32
    return %arg0, %c0_i32 : i32, i32
  }
  func.func @transform_4(%arg0: i32) -> (i32, i32) {
    %c0_i32 = arith.constant 0 : i32
    %c0_i32_0 = arith.constant 0 : i32
    return %arg0, %c0_i32 : i32, i32
  }
}

</mosaic_0001>

<llo_original>
// kernel: tpu_custom_call.1
$region0: #{tpu_custom_call.1}
  #allocation0 [shape = 'u32[]', space=smem, size = 0x4, offset = 0x4, fixed_abs, tag = 'smem constant byte address 0x4 - core index']
  #allocation1 [shape = 'u32[144,128]{1,0:T(1,128)}', space=vmem, size = 0x12000, scoped, tag = 'internal scratch']
  %s0 = inlined_call_operand.hbm [shape: f32[1,128], index: 0, kind: input, shape index: {}]
  %s1 = inlined_call_operand.vmem [shape: f32[1,128], index: 1, kind: input, shape index: {}]
  %s2 = inlined_call_operand.hbm [shape: f32[8,128], index: 2, kind: input, shape index: {}]
  %s3 = inlined_call_operand.hbm [shape: f32[8,128], index: 3, kind: output, shape index: {0}]
  %s4 = inlined_call_operand.hbm [shape: f32[8,128], index: 4, kind: output, shape index: {1}]
  %5 = xla_tuple %s3, %s4
  %s6 = sld [smem:[#allocation0]]
  $region38: #{tpu_custom_call.1} parent=0
    _
  %s8 = ssub.s32 1, %s6
  %s9 = scalar_select 0, %s8, %s6
  $region1: #{tpu_custom_call.1} parent=0
    #allocation2 [shape = 'u8[512]{0}', space=vmem, size = 0x400, scoped, tag = 'input window, operand 0, single buffered']
    #allocation3 [shape = 's32[1]{0}', space=sflag, size = 0x4, scoped, tag = 'scoped memory for tpu_custom_call.1']
    #allocation4 [shape = 's32[1]{0}', space=sflag, size = 0x4, scoped, tag = 'scoped memory for tpu_custom_call.1']
    #allocation5 [shape = 'u8[4096]{0}', space=vmem, size = 0x1000, scoped, tag = 'input window, operand 2, single buffered']
    #allocation6 [shape = 's32[1]{0}', space=sflag, size = 0x4, scoped, tag = 'scoped memory for tpu_custom_call.1']
    #allocation7 [shape = 'u8[4096]{0}', space=vmem, size = 0x1000, scoped, tag = 'output window, operand 0, single buffered']
    #allocation8 [shape = 'u8[4096]{0}', space=vmem, size = 0x1000, scoped, tag = 'output window, operand 1, single buffered']
    #allocation9 [shape = 's32[1]{0}', space=sflag, size = 0x4, scoped, tag = 'scoped memory for tpu_custom_call.1']
    %10 = vsyncpa [#allocation3], 0
    %11 = vsyncpa [#allocation6], 0
    %12 = vsyncpa [#allocation4], 0
    %13 = vsyncpa [#allocation9], 0
    // Predicated region
    $region2: #{tpu_custom_call.1} parent=1 // pred_check
      _
    $region3: #{tpu_custom_call.1} parent=1 // pred_check_branch
      %15 = sbr.rel (0) target = $region5
    $region4: #{tpu_custom_call.1} parent=1 // pred_region
      %s17 = ssub.s32 16, 16
      %18 = vsyncadd [#allocation3], %s17
      %s20 = sshll.u32 [#allocation2], 4
      %s21 = int_to_ptr.vmem [resolvable:$true] %s20
      %23 = dma.hbm_to_vmem [thread:$0]  %s0, 16, %s21, [#allocation3]
    $region5: #{tpu_custom_call.1} parent=1 // pred_fallthru
      _
    // Predicated region
    $region6: #{tpu_custom_call.1} parent=1 // pred_check
      _
    $region7: #{tpu_custom_call.1} parent=1 // pred_check_branch
      %25 = sbr.rel (0) target = $region9
    $region8: #{tpu_custom_call.1} parent=1 // pred_region
      _
    $region9: #{tpu_custom_call.1} parent=1 // pred_fallthru
      _
    // Predicated region
    $region10: #{tpu_custom_call.1} parent=1 // pred_check
      _
    $region11: #{tpu_custom_call.1} parent=1 // pred_check_branch
      %27 = sbr.rel (0) target = $region13
    $region12: #{tpu_custom_call.1} parent=1 // pred_region
      %s29 = ssub.s32 128, 128
      %30 = vsyncadd [#allocation6], %s29
      %s32 = sshll.u32 [#allocation5], 4
      %s33 = int_to_ptr.vmem [resolvable:$true] %s32
      %35 = dma.hbm_to_vmem [thread:$0]  %s2, 128, %s33, [#allocation6]
    $region13: #{tpu_custom_call.1} parent=1 // pred_fallthru
      _
    // Predicated region
    $region14: #{tpu_custom_call.1} parent=1 // pred_check
      _
    $region15: #{tpu_custom_call.1} parent=1 // pred_check_branch
      %37 = sbr.rel (0) target = $region17
    $region16: #{tpu_custom_call.1} parent=1 // pred_region
      %38 = dma.done [#allocation3], 16
    $region17: #{tpu_custom_call.1} parent=1 // pred_fallthru
      _
    // Predicated region
    $region18: #{tpu_custom_call.1} parent=1 // pred_check
      _
    $region19: #{tpu_custom_call.1} parent=1 // pred_check_branch
      %40 = sbr.rel (0) target = $region21
    $region20: #{tpu_custom_call.1} parent=1 // pred_region
      %41 = dma.done [#allocation6], 128
    $region21: #{tpu_custom_call.1} parent=1 // pred_fallthru
      _
    %v42 = vld [vmem:[#allocation5] sm:$0xff]
    %v43 = vld [vmem:[#allocation2] sm:$0x1]
    %v45 = vlaneseq
    %v46 = vshrl.u32 %v45, 7
    %v47 = vsub.s32 0, %v46
    %v48 = vrot.slane %v43, %v47
    %v50 = vmul.f32 %v42, %v48
    %51 = vst [vmem:[#allocation7] sm:$0xff] %v50
    %v52 = vld [vmem:[%s1] sm:$0x1]
    %v54 = vlaneseq
    %v55 = vshrl.u32 %v54, 7
    %v56 = vsub.s32 0, %v55
    %v57 = vrot.slane %v52, %v56
    %v59 = vmul.f32 %v42, %v57
    %60 = vst [vmem:[#allocation8] sm:$0xff] %v59
    // Predicated region
    $region22: #{tpu_custom_call.1} parent=1 // pred_check
      _
    $region23: #{tpu_custom_call.1} parent=1 // pred_check_branch
      %62 = sbr.rel (0) target = $region25
    $region24: #{tpu_custom_call.1} parent=1 // pred_region
      %s64 = ssub.s32 128, 128
      %65 = vsyncadd [#allocation4], %s64
      %s67 = sshll.u32 [#allocation7], 4
      %s68 = int_to_ptr.vmem [resolvable:$true] %s67
      %70 = dma.vmem_to_hbm [thread:$0]  %s68, 128, %s3, [#allocation4]
    $region25: #{tpu_custom_call.1} parent=1 // pred_fallthru
      _
    // Predicated region
    $region26: #{tpu_custom_call.1} parent=1 // pred_check
      _
    $region27: #{tpu_custom_call.1} parent=1 // pred_check_branch
      %72 = sbr.rel (0) target = $region29
    $region28: #{tpu_custom_call.1} parent=1 // pred_region
      %s74 = ssub.s32 128, 128
      %75 = vsyncadd [#allocation9], %s74
      %s77 = sshll.u32 [#allocation8], 4
      %s78 = int_to_ptr.vmem [resolvable:$true] %s77
      %80 = dma.vmem_to_hbm [thread:$0]  %s78, 128, %s4, [#allocation9]
    $region29: #{tpu_custom_call.1} parent=1 // pred_fallthru
      _
    // Predicated region
    $region30: #{tpu_custom_call.1} parent=1 // pred_check
      _
    $region31: #{tpu_custom_call.1} parent=1 // pred_check_branch
      %82 = sbr.rel (0) target = $region33
    $region32: #{tpu_custom_call.1} parent=1 // pred_region
      %83 = dma.done [#allocation4], 128
    $region33: #{tpu_custom_call.1} parent=1 // pred_fallthru
      _
    // Predicated region
    $region34: #{tpu_custom_call.1} parent=1 // pred_check
      _
    $region35: #{tpu_custom_call.1} parent=1 // pred_check_branch
      %85 = sbr.rel (0) target = $region37
    $region36: #{tpu_custom_call.1} parent=1 // pred_region
      %86 = dma.done [#allocation9], 128
    $region37: #{tpu_custom_call.1} parent=1 // pred_fallthru
      _
    %87 = vsyncpa [#allocation3], 1
    %88 = vsyncpa [#allocation6], 1
    %89 = vsyncpa [#allocation4], 1
    %90 = vsyncpa [#allocation9], 1

</llo_original>
